<compile_context>
chip_gen: v7x
topology: tpu7x:2x2x1
jax: 0.10.0
libtpu: 0.0.40
codegen_flags: <defaults>
</compile_context>

<pallas_src>
import jax
import jax.numpy as jnp
from jax.experimental import pallas as pl
from jax.experimental.pallas import tpu as pltpu


def mlp_decoder_kernel(xT_ref, p_ref, o_ref):
    D = xT_ref.shape[0]

    xT = xT_ref[...]                               # [D, tb]  (MXU input dtype)
    w1 = p_ref[:, :D].astype(xT.dtype)             # [H, D]   (native PyTorch layout)
    b1 = p_ref[:, D:D + 1]                         # [H, 1]   f32 column
    w2 = p_ref[:, D + 1:D + 2]                     # [H, 1]   f32 column (MLP2.weight)
    b2 = p_ref[0:1, D + 2:D + 3]                   # [1, 1]   f32 scalar tile

    # Layer 1: MXU matmul with f32 accumulation -> lane-dense [H, tb];
    # bias-add + ReLU on the VPU in f32.
    h = jnp.dot(w1, xT, preferred_element_type=jnp.float32)   # [H, tb]
    h = jnp.maximum(h + b1, 0.0)

    # Layer 2 (H -> 1): VPU broadcast-mul + XLU sublane reduce (no N=1 matmul).
    out = jnp.sum(h * w2, axis=0, keepdims=True) + b2         # [1, tb]
    o_ref[...] = out.astype(o_ref.dtype)                      # full-lane store


def pack_params(w1, b1, w2, b2):
    """Pack W1/b1/w2/b2 into one f32 slab [H, D+128] -> a single param DMA.

    Layout: [:, :D]=W1, [:, D]=b1, [:, D+1]=w2 (as a column), [0, D+2]=b2.
    The extra 128 lanes keep the vector columns in their own lane tile when D
    is a multiple of 128 (e.g. the module default D=512).
    NOTE: for static weights this should be built once and cached, not per call.
    """
    H, D = w1.shape
    slab = jnp.zeros((H, D + 128), dtype=jnp.float32)
    slab = slab.at[:, :D].set(jnp.asarray(w1, jnp.float32))
    slab = slab.at[:, D].set(jnp.asarray(b1, jnp.float32))
    slab = slab.at[:, D + 1].set(jnp.asarray(w2, jnp.float32).reshape(H))
    slab = slab.at[0, D + 2].set(jnp.asarray(b2, jnp.float32).reshape(-1)[0])
    return slab


def mlp_decoder(x, w1, b1, w2, b2, *, tb=None, mxu_dtype=None):
    """x: [B, D]; w1: [H, D]; b1: [H]; w2: [1, H]; b2: [1] (PyTorch Linear layout)."""
    B, D = x.shape
    H = w1.shape[0]
    P = D + 128
    compute_dtype = x.dtype if mxu_dtype is None else mxu_dtype

    # Batch tile: lanes carry the batch in the transposed layout, so tiles must
    # be a multiple of 128 (or the whole batch). >=512 reaches ~85% of the HBM
    # roofline; >=2 grid steps lets v7x shard tiles across its 2 TensorCores.
    if tb is None:
        tb = B if B <= 1024 else 512
    if tb != B:
        tb = max(128, (min(tb, B) // 128) * 128)
    grid = (pl.cdiv(B, tb),)

    params = pack_params(w1, b1, w2, b2)                 # [H, D+128] f32
    xT = jnp.asarray(x).T.astype(compute_dtype)          # [D, B], batch on lanes

    itemsize = jnp.dtype(compute_dtype).itemsize
    cost = pl.CostEstimate(
        flops=2 * B * D * H + 2 * B * H,
        transcendentals=0,
        bytes_accessed=B * D * itemsize + H * P * 4 + B * jnp.dtype(x.dtype).itemsize,
    )

    out_row = pl.pallas_call(
        mlp_decoder_kernel,
        out_shape=jax.ShapeDtypeStruct((1, B), x.dtype),
        grid_spec=pl.GridSpec(
            grid=grid,
            in_specs=[
                pl.BlockSpec((D, tb), lambda i: (0, i)),   # x^T batch tile (lanes = batch)
                pl.BlockSpec((H, P), lambda i: (0, 0)),    # packed params, resident
            ],
            out_specs=pl.BlockSpec((1, tb), lambda i: (0, i)),   # lane-dense output row
        ),
        compiler_params=pltpu.CompilerParams(
            dimension_semantics=("parallel",)),            # batch tiles independent
        cost_estimate=cost,
    )(xT, params)

    return out_row.reshape(B, 1)                           # [1, B] -> [B, 1], contiguous


def reference(x, w1, b1, w2, b2):
    h = jnp.maximum(x @ w1.T + b1, 0.0)
    return h @ w2.T + b2


if __name__ == "__main__":
    B = 8            # batch
    D = 64           # input_dim
    H = D // 2       # hidden = input_dim // 2 (as in the module)

    key = jax.random.PRNGKey(0)
    kx, kw1, kb1, kw2, kb2 = jax.random.split(key, 5)

    x  = jax.random.normal(kx, (B, D), dtype=jnp.float32)
    # Deterministic synthetic parameters, PyTorch nn.Linear shapes.
    w1 = 0.1 * jax.random.normal(kw1, (H, D), dtype=jnp.float32)   # MLP1.weight
    b1 = 0.1 * jax.random.normal(kb1, (H,),   dtype=jnp.float32)   # MLP1.bias
    w2 = 0.1 * jax.random.normal(kw2, (1, H), dtype=jnp.float32)   # MLP2.weight
    b2 = 0.1 * jax.random.normal(kb2, (1,),   dtype=jnp.float32)   # MLP2.bias

    # Small-shape run (single grid step, tb = B).
    out = jax.block_until_ready(mlp_decoder(x, w1, b1, w2, b2))
    ref = reference(x, w1, b1, w2, b2)
    assert out.shape == (B, 1)
    assert jnp.allclose(out, ref, atol=1e-4, rtol=1e-4), \
        f"max abs err {jnp.max(jnp.abs(out - ref))}"

    # Tiled-path sanity check: multi-step grid with 128-lane batch tiles.
    B2 = 256
    x2 = jax.random.normal(kx, (B2, D), dtype=jnp.float32)
    out2 = jax.block_until_ready(mlp_decoder(x2, w1, b1, w2, b2, tb=128))
    ref2 = reference(x2, w1, b1, w2, b2)
    assert out2.shape == (B2, 1)
    assert jnp.allclose(out2, ref2, atol=1e-4, rtol=1e-4), \
        f"max abs err {jnp.max(jnp.abs(out2 - ref2))}"

    print("KERNEL_OK")
</pallas_src>

<mosaic_0001>
module attributes {stable_mosaic.version = 11 : i64} {
  func.func @mlp_decoder_kernel(%arg0: i32, %arg1: memref<64x8xf32, #tpu.memory_space<vmem>>, %arg2: memref<32x192xf32, #tpu.memory_space<vmem>>, %arg3: memref<1x8xf32, #tpu.memory_space<vmem>>) attributes {dimension_semantics = [#tpu.dimension_semantics<parallel>], iteration_bounds = array<i64: 1>, scalar_prefetch = 0 : i64, scratch_operands = 0 : i64, tpu.core_type = #tpu.core_type<tc>, window_params = [{transform_indices = @transform_0, window_bounds = array<i64: 64, 8>}, {pipeline_mode = #tpu.pipeline_mode<synchronous>, transform_indices = @transform_1, window_bounds = array<i64: 32, 192>}, {transform_indices = @transform_2, window_bounds = array<i64: 1, 8>}]} {
    %c0 = arith.constant 0 : index
    %c0_0 = arith.constant 0 : index
    %0 = vector.load %arg1[%c0, %c0_0] : memref<64x8xf32, #tpu.memory_space<vmem>>, vector<64x8xf32>
    %c0_1 = arith.constant 0 : index
    %c0_2 = arith.constant 0 : index
    %1 = vector.load %arg2[%c0_1, %c0_2] : memref<32x192xf32, #tpu.memory_space<vmem>>, vector<32x64xf32>
    %c0_3 = arith.constant 0 : index
    %c64 = arith.constant 64 : index
    %2 = vector.load %arg2[%c0_3, %c64] : memref<32x192xf32, #tpu.memory_space<vmem>>, vector<32x1xf32>
    %c0_4 = arith.constant 0 : index
    %c65 = arith.constant 65 : index
    %3 = vector.load %arg2[%c0_4, %c65] : memref<32x192xf32, #tpu.memory_space<vmem>>, vector<32x1xf32>
    %c0_5 = arith.constant 0 : index
    %c66 = arith.constant 66 : index
    %4 = vector.load %arg2[%c0_5, %c66] : memref<32x192xf32, #tpu.memory_space<vmem>>, vector<1x1xf32>
    %cst = arith.constant dense<0.000000e+00> : vector<32x8xf32>
    %5 = tpu.matmul %1, %0, %cst {dimension_numbers = #tpu.dot_dimension_numbers<[1], [0], [0], [1], [0, 0, 1, 1], [], []>} : vector<32x64xf32>, vector<64x8xf32>, vector<32x8xf32> -> vector<32x8xf32>
    %6 = vector.broadcast %2 : vector<32x1xf32> to vector<32x8xf32>
    %7 = arith.addf %5, %6 : vector<32x8xf32>
    %cst_6 = arith.constant 0.000000e+00 : f32
    %8 = vector.broadcast %cst_6 : f32 to vector<32x8xf32>
    %9 = arith.maximumf %7, %8 : vector<32x8xf32>
    %10 = vector.broadcast %3 : vector<32x1xf32> to vector<32x8xf32>
    %11 = arith.mulf %9, %10 : vector<32x8xf32>
    %cst_7 = arith.constant dense<0.000000e+00> : vector<8xf32>
    %12 = vector.multi_reduction <add>, %11, %cst_7 [0] : vector<32x8xf32> to vector<8xf32>
    %13 = vector.shape_cast %12 : vector<8xf32> to vector<1x8xf32>
    %14 = vector.broadcast %4 : vector<1x1xf32> to vector<1x8xf32>
    %15 = arith.addf %13, %14 : vector<1x8xf32>
    %c0_8 = arith.constant 0 : index
    %c0_9 = arith.constant 0 : index
    %16 = vector.load %arg3[%c0_8, %c0_9] : memref<1x8xf32, #tpu.memory_space<vmem>>, vector<1x8xf32>
    tpu.vector_store %arg3[%c0_8, %c0_9], %15 {strides = array<i32>} : memref<1x8xf32, #tpu.memory_space<vmem>>, vector<1x8xf32>,
    return
  }
  func.func @transform_0(%arg0: i32) -> (i32, i32) {
    %c0_i32 = arith.constant 0 : i32
    %c0_i32_0 = arith.constant 0 : i32
    return %c0_i32, %arg0 : i32, i32
  }
  func.func @transform_1(%arg0: i32) -> (i32, i32) {
    %c0_i32 = arith.constant 0 : i32
    %c0_i32_0 = arith.constant 0 : i32
    %c0_i32_1 = arith.constant 0 : i32
    return %c0_i32, %c0_i32_0 : i32, i32
  }
  func.func @transform_2(%arg0: i32) -> (i32, i32) {
    %c0_i32 = arith.constant 0 : i32
    %c0_i32_0 = arith.constant 0 : i32
    return %c0_i32, %arg0 : i32, i32
  }
}

</mosaic_0001>

<llo_original>
// kernel: tpu_custom_call.1
$region0: #{tpu_custom_call.1}
  #allocation0 [shape = 'u32[]', space=smem, size = 0x4, offset = 0x4, fixed_abs, tag = 'smem constant byte address 0x4 - core index']
  #allocation1 [shape = 'u32[144,128]{1,0:T(1,128)}', space=vmem, size = 0x12000, scoped, tag = 'internal scratch']
  %s0 = inlined_call_operand.vmem [shape: f32[64,8], index: 0, kind: input, shape index: {}]
  %s1 = inlined_call_operand.vmem [shape: f32[32,192], index: 1, kind: input, shape index: {}]
  %s2 = inlined_call_operand.hbm [shape: f32[1,8], index: 2, kind: output, shape index: {}]
  %s3 = sld [smem:[#allocation0]]
  $region18: #{tpu_custom_call.1} parent=0
    _
  %s5 = ssub.s32 1, %s3
  %s6 = scalar_select 0, %s5, %s3
  $region1: #{tpu_custom_call.1} parent=0
    #allocation2 [shape = 'u8[512]{0}', space=vmem, size = 0x400, scoped, tag = 'output window, operand 0, single buffered']
    #allocation3 [shape = 's32[1]{0}', space=sflag, size = 0x4, scoped, tag = 'scoped memory for tpu_custom_call.1']
    %7 = vsyncpa [#allocation3], 0
    // Predicated region
    $region2: #{tpu_custom_call.1} parent=1 // pred_check
      _
    $region3: #{tpu_custom_call.1} parent=1 // pred_check_branch
      %9 = sbr.rel (0) target = $region5
    $region4: #{tpu_custom_call.1} parent=1 // pred_region
      _
    $region5: #{tpu_custom_call.1} parent=1 // pred_fallthru
      _
    // Predicated region
    $region6: #{tpu_custom_call.1} parent=1 // pred_check
      _
    $region7: #{tpu_custom_call.1} parent=1 // pred_check_branch
      %11 = sbr.rel (0) target = $region9
    $region8: #{tpu_custom_call.1} parent=1 // pred_region
      _
    $region9: #{tpu_custom_call.1} parent=1 // pred_fallthru
      _
    %v12 = vld [vmem:[%s0] sm:$0xff]
    %v13 = vld [vmem:[%s0 + $0x8] sm:$0xff]
    %v14 = vld [vmem:[%s0 + $0x10] sm:$0xff]
    %v15 = vld [vmem:[%s0 + $0x18] sm:$0xff]
    %v16 = vld [vmem:[%s0 + $0x20] sm:$0xff]
    %v17 = vld [vmem:[%s0 + $0x28] sm:$0xff]
    %v18 = vld [vmem:[%s0 + $0x30] sm:$0xff]
    %v19 = vld [vmem:[%s0 + $0x38] sm:$0xff]
    %v20 = vld [vmem:[%s1] sm:$0xff]
    %v21 = vld [vmem:[%s1 + $0x10] sm:$0xff]
    %v22 = vld [vmem:[%s1 + $0x20] sm:$0xff]
    %v23 = vld [vmem:[%s1 + $0x30] sm:$0xff]
    %v24 = vld [vmem:[%s1] ss:$0 sm:$0xff]
    %26 = vset.pattern.permute.xlu0 64
    %27 = vperm.xlu0 %26, %v20
    %v28 = vpop.permute.xlu0 %27
    %31 = vset.pattern.permute.xlu0 64
    %32 = vperm.xlu0 %31, %v21
    %v33 = vpop.permute.xlu0 %32
    %36 = vset.pattern.permute.xlu0 64
    %37 = vperm.xlu0 %36, %v22
    %v38 = vpop.permute.xlu0 %37
    %41 = vset.pattern.permute.xlu0 64
    %42 = vperm.xlu0 %41, %v23
    %v43 = vpop.permute.xlu0 %42
    %vm45 = vcmask 523264
    %v46 = vsel %vm45, %v20, 0
    %v48 = vsel %vm45, %v21, 0
    %v50 = vsel %vm45, %v22, 0
    %v52 = vsel %vm45, %v23, 0
    %54 = vmatprep.subr.mxu0 0.0
    %55 = vmatpush1.msra.mxu0 %v12
    %56 = vmatprep.subr.mxu0 0.0
    %57 = vmatpush1.msra.mxu0 %v13
    %58 = vmatprep.subr.mxu0 0.0
    %59 = vmatpush1.msra.mxu0 %v14
    %60 = vmatprep.subr.mxu0 0.0
    %61 = vmatpush1.msra.mxu0 %v15
    %62 = vmatprep.subr.mxu0 0.0
    %63 = vmatpush1.msra.mxu0 %v16
    %64 = vmatprep.subr.mxu0 0.0
    %65 = vmatpush1.msra.mxu0 %v17
    %66 = vmatprep.subr.mxu0 0.0
    %67 = vmatpush1.msra.mxu0 %v18
    %68 = vmatprep.subr.mxu0 0.0
    %69 = vmatpush1.msra.mxu0 %v19
    %70 = vmatprep.subr.mxu0 0.0
    %71 = vmatpush1.msra.mxu0 0.0
    %72 = vmatprep.subr.mxu0 0.0
    %73 = vmatpush1.msra.mxu0 0.0
    %74 = vmatprep.subr.mxu0 0.0
    %75 = vmatpush1.msra.mxu0 0.0
    %76 = vmatprep.subr.mxu0 0.0
    %77 = vmatpush1.msra.mxu0 0.0
    %78 = vmatprep.subr.mxu0 0.0
    %79 = vmatpush1.msra.mxu0 0.0
    %80 = vmatprep.subr.mxu0 0.0
    %81 = vmatpush1.msra.mxu0 0.0
    %82 = vmatprep.subr.mxu0 0.0
    %83 = vmatpush1.msra.mxu0 0.0
    %84 = vmatprep.subr.mxu0 0.0
    %85 = vmatpush1.msra.mxu0 0.0
    %86 = vmatprep.subr.mxu0 0.0
    %87 = vmatpush1.msra.mxu0 0.0
    %88 = vmatprep.subr.mxu0 0.0
    %89 = vmatpush1.msra.mxu0 0.0
    %90 = vmatprep.subr.mxu0 0.0
    %91 = vmatpush1.msra.mxu0 0.0
    %92 = vmatprep.subr.mxu0 0.0
    %93 = vmatpush1.msra.mxu0 0.0
    %94 = vmatprep.subr.mxu0 0.0
    %95 = vmatpush1.msra.mxu0 0.0
    %96 = vmatprep.subr.mxu0 0.0
    %97 = vmatpush1.msra.mxu0 0.0
    %98 = vmatprep.subr.mxu0 0.0
    %99 = vmatpush1.msra.mxu0 0.0
    %100 = vmatprep.subr.mxu0 0.0
    %101 = vmatpush1.msra.mxu0 0.0
    %102 = vmatprep.subr.mxu0 0.0
    %103 = vmatpush1.msra.mxu0 0.0
    %104 = vmatprep.subr.mxu0 0.0
    %105 = vmatpush1.msra.mxu0 0.0
    %106 = vmatprep.subr.mxu0 0.0
    %107 = vmatpush1.msra.mxu0 0.0
    %108 = vmatprep.subr.mxu0 0.0
    %109 = vmatpush1.msra.mxu0 0.0
    %110 = vmatprep.subr.mxu0 0.0
    %111 = vmatpush1.msra.mxu0 0.0
    %112 = vmatprep.subr.mxu0 0.0
    %113 = vmatpush1.msra.mxu0 0.0
    %114 = vmatprep.subr.mxu0 0.0
    %115 = vmatpush1.msra.mxu0 0.0
    %116 = vmatprep.subr.mxu0 0.0
    %117 = vmatpush1.msra.mxu0 0.0
    %118 = vmatprep.mubr.f32.mxu0 0.0
    %119 = vmatmul.mubr.f32.gmra.mrb[0].mxu0 %v46
    %v120 = vpop.f32.mrb[0].mxu0
    %v121 = vadd.f32 %v28, %v120
    %v122 = vpop.f32.mrb[0].mxu0
    %123 = vmatprep.mubr.f32.mxu0 0.0
    %124 = vmatmul.mubr.f32.gmra.mrb[0].mxu0 %v48
    %v125 = vpop.f32.mrb[0].mxu0
    %v126 = vadd.f32 %v33, %v125
    %v127 = vpop.f32.mrb[0].mxu0
    %128 = vmatprep.mubr.f32.mxu0 0.0
    %129 = vmatmul.mubr.f32.gmra.mrb[0].mxu0 %v50
    %v130 = vpop.f32.mrb[0].mxu0
    %v131 = vadd.f32 %v38, %v130
    %v132 = vpop.f32.mrb[0].mxu0
    %133 = vmatprep.mubr.f32.mxu0 0.0
    %134 = vmatmul.mubr.f32.gmra.mrb[0].mxu0 %v52
    %v135 = vpop.f32.mrb[0].mxu0
    %v136 = vadd.f32 %v43, %v135
    %v137 = vpop.f32.mrb[0].mxu0
    %138 = vdwg.mxu0
    %v139 = vmax.f32 %v121, 0.0
    %v140 = vmax.f32 %v126, 0.0
    %v141 = vmax.f32 %v131, 0.0
    %v142 = vmax.f32 %v136, 0.0
    %143 = vset.pattern.permute.xlu0 65
    %144 = vperm.xlu0 %143, %v20
    %v145 = vpop.permute.xlu0 %144
    %147 = vset.pattern.permute.xlu0 65
    %148 = vperm.xlu0 %147, %v21
    %v149 = vpop.permute.xlu0 %148
    %151 = vset.pattern.permute.xlu0 65
    %152 = vperm.xlu0 %151, %v22
    %v153 = vpop.permute.xlu0 %152
    %155 = vset.pattern.permute.xlu0 65
    %156 = vperm.xlu0 %155, %v23
    %v157 = vpop.permute.xlu0 %156
    %v159 = vmul.f32 %v139, %v145
    %v160 = vmul.f32 %v140, %v149
    %v161 = vmul.f32 %v141, %v153
    %v162 = vmul.f32 %v142, %v157
    %vm163 = vcmask 64512
    %v164 = vsel %vm163, %v159, 0.0
    %v165 = vsel %vm163, %v160, 0.0
    %v166 = vadd.f32 %v164, %v165
    %v167 = vsel %vm163, %v161, 0.0
    %v168 = vadd.f32 %v166, %v167
    %v169 = vsel %vm163, %v162, 0.0
    %v170 = vadd.f32 %v168, %v169
    %v171 = vrot.slane %v170, 4
    %v172 = vadd.f32 %v170, %v171
    %v173 = vrot.slane %v172, 2
    %v174 = vadd.f32 %v172, %v173
    %v175 = vrot.slane %v174, 1
    %v176 = vadd.f32 %v174, %v175
    %178 = vset.pattern.permute.xlu0 66
    %179 = vperm.xlu0 %178, %v24
    %v180 = vpop.permute.xlu0 %179
    %v182 = vadd.f32 %v176, %v180
    %vm183 = vcmask 57344
    %184 = vst.msk [vmem:[#allocation2] sm:$0x1] %vm183, %v182
    // Predicated region
    $region10: #{tpu_custom_call.1} parent=1 // pred_check
      _
    $region11: #{tpu_custom_call.1} parent=1 // pred_check_branch
      %186 = sbr.rel (0) target = $region13
    $region12: #{tpu_custom_call.1} parent=1 // pred_region
      %s188 = ssub.s32 16, 16
      %189 = vsyncadd [#allocation3], %s188
      %s191 = sshll.u32 [#allocation2], 4
      %s192 = int_to_ptr.vmem [resolvable:$true] %s191
      %194 = dma.vmem_to_hbm [thread:$0]  %s192, 16, %s2, [#allocation3]
    $region13: #{tpu_custom_call.1} parent=1 // pred_fallthru
      _
    // Predicated region
    $region14: #{tpu_custom_call.1} parent=1 // pred_check
      _
    $region15: #{tpu_custom_call.1} parent=1 // pred_check_branch
      %196 = sbr.rel (0) target = $region17
    $region16: #{tpu_custom_call.1} parent=1 // pred_region
      %197 = dma.done [#allocation3], 16
    $region17: #{tpu_custom_call.1} parent=1 // pred_fallthru
      _
    %198 = vsyncpa [#allocation3], 1

</llo_original>
